<compile_context>
chip_gen: v7x
topology: tpu7x:2x2x1
jax: 0.10.0
libtpu: 0.0.40
codegen_flags: <defaults>
</compile_context>

<pallas_src>
import functools

import jax
import jax.numpy as jnp
from jax import lax
from jax.experimental import pallas as pl
from jax.experimental.pallas import tpu as pltpu


_LANE = 128


def _round_up(v, m):
    return ((v + m - 1) // m) * m


@functools.lru_cache(maxsize=None)
def _vmem_capacity_bytes():
    try:
        info = pltpu.get_tpu_info()
        cap = int(getattr(info, "vmem_capacity_bytes", 0) or 0)
        if cap > 0:
            return cap
    except Exception:
        pass
    return 64 * 1024 * 1024  # conservative fallback (v7x-sized)


# ----------------------------- kernels ------------------------------------ #

def _ln2d_fused_kernel(x_ref, g_ref, b_ref, o_ref, *, eps, n_elems, ddof):
    # x_ref: (1, C, HW) — the whole, UNPADDED sample (block == full array on
    # the last two dims), so every element is real data: no masking needed.
    xf = x_ref[...].astype(jnp.float32)

    mean = jnp.sum(xf) / n_elems
    d = xf - mean                      # two-pass (centered) variance: robust
    var = jnp.sum(d * d) / ddof        # against cancellation, x is VMEM-resident
    std = jnp.sqrt(var)

    gamma = g_ref[...].astype(jnp.float32)   # (1, C, 1)
    beta = b_ref[...].astype(jnp.float32)
    a = gamma / (std + eps)                  # only C divides per sample
    o_ref[...] = (d * a + beta).astype(o_ref.dtype)


def _ln2d_stats_kernel(x_ref, s1_ref, s2_ref, *, hw, thw, tiles_per_split,
                       needs_mask):
    # x_ref: (1, C, thw) HW-tile.  s*_ref: (1, 1, 1, 128) per-(sample, split)
    # accumulators (same output block across the arbitrary t axis).
    t = pl.program_id(2)

    @pl.when(t == 0)
    def _():
        s1_ref[...] = jnp.zeros_like(s1_ref)
        s2_ref[...] = jnp.zeros_like(s2_ref)

    x = x_ref[...].astype(jnp.float32)
    if needs_mask:
        # Ragged last HW tile: out-of-bounds block contents are unspecified,
        # so zero them before reducing (true element count is used later).
        start = (pl.program_id(1) * tiles_per_split + t) * thw
        lane = lax.broadcasted_iota(jnp.int32, x.shape, dimension=2)
        x = jnp.where(start + lane < hw, x, 0.0)

    s1_ref[...] += jnp.sum(x)
    s2_ref[...] += jnp.sum(x * x)


def _ln2d_apply_kernel(x_ref, a_ref, b_ref, o_ref):
    # out = x * a + b with folded per-(sample, channel) scale/shift.
    # No mask needed: garbage lanes of a ragged input tile land only in the
    # out-of-bounds part of the output block, which Pallas write-masks.
    o_ref[...] = (x_ref[...].astype(jnp.float32) * a_ref[...]
                  + b_ref[...]).astype(o_ref.dtype)


# ----------------------------- wrapper ------------------------------------ #

def layer_norm_2d(x, gamma=None, beta=None, *, eps=1e-5, affine=True,
                  force_tiled=False, tile_hw=None, stats_split=None,
                  donate_x=False):
    """x: (N, C, H, W). gamma, beta: (C,) params (ignored if affine=False)."""
    N, C, H, W = x.shape
    HW = H * W
    n_elems = float(C * HW)
    ddof = max(n_elems - 1.0, 1.0)          # guard C*H*W == 1
    eps = float(eps)
    itemsize = jnp.dtype(x.dtype).itemsize

    # ---- generation-aware budgets, derived from physical VMEM ----
    vmem_cap = _vmem_capacity_bytes()
    vmem_limit = max(32 << 20, int(vmem_cap * 0.70))   # ~90 MiB v5e/v6e, ~44 MiB v7x
    dual_tc = vmem_cap <= (80 << 20)                   # v7x-like: 64 MiB VMEM, 2 TCs
    tile_target = (6 << 20) if dual_tc else (4 << 20)  # f32 bytes per HW tile
    headroom = 8 << 20

    bytes_x = C * HW * itemsize
    bytes_f32 = C * HW * 4

    if affine:
        g = gamma.astype(jnp.float32)
        b = beta.astype(jnp.float32)
    else:
        g = jnp.ones((C,), jnp.float32)
        b = jnp.zeros((C,), jnp.float32)

    x2 = x.reshape(N, C, HW)   # free reshape; NO padding, NO extra copies

    # Fused path VMEM estimate: 2x in + 2x out double buffers (x dtype)
    # + ~2 f32 temporaries (centered copy).  bf16 inputs therefore get a
    # ~2x larger per-sample cap than f32.
    fused_fits = (4 * bytes_x + 2 * bytes_f32) <= (vmem_limit - headroom)
    # On dual-TC chips a single big sample keeps one core idle in the fused
    # path (grid only over N); prefer the tiled path, whose HW-tile axes are
    # parallel and feed both cores.
    prefer_split = dual_tc and N == 1 and bytes_f32 >= 4 * tile_target
    fused = (not force_tiled) and fused_fits and not prefer_split

    alias = {0: 0} if donate_x else {}

    if fused:
        # ---------- single-read path: whole unpadded sample per grid step ----------
        g3 = g.reshape(1, C, 1)
        b3 = b.reshape(1, C, 1)
        kernel = functools.partial(_ln2d_fused_kernel, eps=eps,
                                   n_elems=n_elems, ddof=ddof)
        out = pl.pallas_call(
            kernel,
            out_shape=jax.ShapeDtypeStruct((N, C, HW), x.dtype),
            grid_spec=pltpu.PrefetchScalarGridSpec(
                num_scalar_prefetch=0,
                grid=(N,),
                in_specs=[
                    pl.BlockSpec((1, C, HW), lambda n: (n, 0, 0)),
                    pl.BlockSpec((1, C, 1), lambda n: (0, 0, 0)),
                    pl.BlockSpec((1, C, 1), lambda n: (0, 0, 0)),
                ],
                out_specs=pl.BlockSpec((1, C, HW), lambda n: (n, 0, 0)),
            ),
            compiler_params=pltpu.CompilerParams(
                dimension_semantics=("parallel",),
                vmem_limit_bytes=vmem_limit,
            ),
            input_output_aliases=alias,
        )(x2, g3, b3)
        return out.reshape(N, C, H, W)

    # ---------- tiled path: stats pass + apply pass over HW tiles ----------
    if tile_hw is None:
        thw = (tile_target // (C * 4)) // _LANE * _LANE
    else:
        thw = _round_up(int(tile_hw), _LANE)
    thw = max(_LANE, min(thw, _round_up(HW, _LANE)))
    T = pl.cdiv(HW, thw)

    # Optional split of the reduction axis across a leading 'parallel' axis so
    # a single sample can use both TensorCores on dual-TC chips.  Only used
    # when the (S, t) grid is exact (no out-of-range tile indices).
    if stats_split is None:
        S = 2 if (dual_tc and N == 1 and T >= 4) else 1
    else:
        S = max(1, int(stats_split))
    S = min(S, T)
    if T % S != 0:
        S = 1
    tiles_per_split = T // S
    needs_mask = (HW % thw) != 0

    stats_kernel = functools.partial(
        _ln2d_stats_kernel, hw=HW, thw=thw,
        tiles_per_split=tiles_per_split, needs_mask=needs_mask)

    # Pass 1: per-(sample, split) sum and sum-of-squares.
    s1_raw, s2_raw = pl.pallas_call(
        stats_kernel,
        out_shape=(jax.ShapeDtypeStruct((N, S, 1, _LANE), jnp.float32),
                   jax.ShapeDtypeStruct((N, S, 1, _LANE), jnp.float32)),
        grid_spec=pltpu.PrefetchScalarGridSpec(
            num_scalar_prefetch=0,
            grid=(N, S, tiles_per_split),
            in_specs=[pl.BlockSpec(
                (1, C, thw),
                lambda n, s, t: (n, 0, s * tiles_per_split + t))],
            out_specs=(pl.BlockSpec((1, 1, 1, _LANE), lambda n, s, t: (n, s, 0, 0)),
                       pl.BlockSpec((1, 1, 1, _LANE), lambda n, s, t: (n, s, 0, 0))),
        ),
        compiler_params=pltpu.CompilerParams(
            dimension_semantics=("parallel", "parallel", "arbitrary"),
            vmem_limit_bytes=vmem_limit,
        ),
    )(x2)

    # Tiny (N, C) coefficient math in plain JAX.
    s1 = jnp.sum(s1_raw[:, :, 0, 0], axis=1)          # (N,)
    s2 = jnp.sum(s2_raw[:, :, 0, 0], axis=1)
    mean = s1 / n_elems
    var = jnp.maximum((s2 - s1 * mean) / ddof, 0.0)    # clamp vs cancellation
    std = jnp.sqrt(var)
    a = g[None, :] / (std + eps)[:, None]              # (N, C)
    bb = b[None, :] - mean[:, None] * a
    a3 = a.reshape(N, C, 1)
    b3 = bb.reshape(N, C, 1)

    # Pass 2: out = x * a + b, fully parallel over (N, T).
    out = pl.pallas_call(
        _ln2d_apply_kernel,
        out_shape=jax.ShapeDtypeStruct((N, C, HW), x.dtype),
        grid_spec=pltpu.PrefetchScalarGridSpec(
            num_scalar_prefetch=0,
            grid=(N, T),
            in_specs=[
                pl.BlockSpec((1, C, thw), lambda n, t: (n, 0, t)),
                pl.BlockSpec((1, C, 1), lambda n, t: (n, 0, 0)),
                pl.BlockSpec((1, C, 1), lambda n, t: (n, 0, 0)),
            ],
            out_specs=pl.BlockSpec((1, C, thw), lambda n, t: (n, 0, t)),
        ),
        compiler_params=pltpu.CompilerParams(
            dimension_semantics=("parallel", "parallel"),
            vmem_limit_bytes=vmem_limit,
        ),
        input_output_aliases=alias,
    )(x2, a3, b3)
    return out.reshape(N, C, H, W)


# ------------------------------- test -------------------------------------- #

if __name__ == "__main__":
    key = jax.random.PRNGKey(0)
    k_x, k_g, k_x2, k_x3, k_x4 = jax.random.split(key, 5)

    def reference(x, gamma, beta, eps=1e-5):
        n = x.shape[0]
        xf = x.reshape(n, -1)
        mean = xf.mean(axis=1).reshape(-1, 1, 1, 1)
        std = jnp.sqrt(xf.var(axis=1, ddof=1)).reshape(-1, 1, 1, 1)  # torch .std(): unbiased
        y = (x - mean) / (std + eps)
        return y * gamma.reshape(1, -1, 1, 1) + beta.reshape(1, -1, 1, 1)

    # Params matching nn.Parameter(torch.rand(c_in)) / torch.zeros(c_in).
    C = 4
    gamma = jax.random.uniform(k_g, (C,), dtype=jnp.float32)
    beta = jnp.zeros((C,), dtype=jnp.float32)

    # Case 1: small sample -> fused single-read path (whole unpadded sample).
    x = jax.random.normal(k_x, (2, C, 16, 16), dtype=jnp.float32)
    out = jax.block_until_ready(layer_norm_2d(x, gamma, beta, eps=1e-5, affine=True))
    ref = reference(x, gamma, beta)
    assert jnp.allclose(out, ref, atol=1e-4, rtol=1e-4), "fused path mismatch"

    # Case 2: forced tiled stats+apply path with a ragged last HW tile
    # (HW=196 is not a multiple of 128) -> exercises the in-kernel iota mask
    # and the partial (write-masked) output blocks.
    x2 = jax.random.normal(k_x2, (2, C, 14, 14), dtype=jnp.float32)
    out2 = jax.block_until_ready(
        layer_norm_2d(x2, gamma, beta, eps=1e-5, affine=True,
                      force_tiled=True, tile_hw=128, stats_split=1))
    ref2 = reference(x2, gamma, beta)
    assert jnp.allclose(out2, ref2, atol=1e-4, rtol=1e-4), "tiled path mismatch"

    # Case 3: forced tiled path with a 2-way stats split (N=1, HW=512 -> T=4,
    # two splits of 2 tiles each) -> exercises the dual-TensorCore stats grid.
    x3 = jax.random.normal(k_x3, (1, C, 16, 32), dtype=jnp.float32)
    out3 = jax.block_until_ready(
        layer_norm_2d(x3, gamma, beta, eps=1e-5, affine=True,
                      force_tiled=True, tile_hw=128, stats_split=2))
    ref3 = reference(x3, gamma, beta)
    assert jnp.allclose(out3, ref3, atol=1e-4, rtol=1e-4), "split-stats path mismatch"

    # Case 4: bf16 input through the fused path (params stay f32 in-kernel).
    x4 = jax.random.normal(k_x4, (2, C, 16, 16), dtype=jnp.float32)
    out4 = jax.block_until_ready(
        layer_norm_2d(x4.astype(jnp.bfloat16), gamma, beta, eps=1e-5, affine=True))
    ref4 = reference(x4, gamma, beta)
    assert jnp.allclose(out4.astype(jnp.float32), ref4, atol=3e-2, rtol=3e-2), \
        "bf16 fused path mismatch"

    print("KERNEL_OK")
</pallas_src>

<mosaic_0001>
module attributes {stable_mosaic.version = 11 : i64} {
  func.func @_ln2d_fused_kernel(%arg0: i32, %arg1: memref<1x4x256xf32, #tpu.memory_space<vmem>>, %arg2: memref<1x4x1xf32, #tpu.memory_space<vmem>>, %arg3: memref<1x4x1xf32, #tpu.memory_space<vmem>>, %arg4: memref<1x4x256xf32, #tpu.memory_space<vmem>>) attributes {dimension_semantics = [#tpu.dimension_semantics<parallel>], iteration_bounds = array<i64: 2>, scalar_prefetch = 0 : i64, scratch_operands = 0 : i64, tpu.core_type = #tpu.core_type<tc>, window_params = [{transform_indices = @transform_0, window_bounds = array<i64: 1, 4, 256>}, {pipeline_mode = #tpu.pipeline_mode<synchronous>, transform_indices = @transform_1, window_bounds = array<i64: 1, 4, 1>}, {pipeline_mode = #tpu.pipeline_mode<synchronous>, transform_indices = @transform_2, window_bounds = array<i64: 1, 4, 1>}, {transform_indices = @transform_3, window_bounds = array<i64: 1, 4, 256>}]} {
    %c0 = arith.constant 0 : index
    %c0_0 = arith.constant 0 : index
    %c0_1 = arith.constant 0 : index
    %0 = vector.load %arg1[%c0, %c0_0, %c0_1] : memref<1x4x256xf32, #tpu.memory_space<vmem>>, vector<1x4x256xf32>
    %1 = vector.shape_cast %0 : vector<1x4x256xf32> to vector<1x1x4x256xf32>
    %cst = arith.constant dense<0.000000e+00> : vector<1xf32>
    %2 = vector.multi_reduction <add>, %1, %cst [1, 2, 3] : vector<1x1x4x256xf32> to vector<1xf32>
    %3 = vector.shape_cast %2 : vector<1xf32> to vector<1x1x1x1xf32>
    %4 = vector.extract %3[0, 0, 0, 0] : f32 from vector<1x1x1x1xf32>
    %cst_2 = arith.constant 1.024000e+03 : f32
    %5 = arith.divf %4, %cst_2 : f32
    %6 = vector.broadcast %5 : f32 to vector<1x4x256xf32>
    %7 = arith.subf %0, %6 : vector<1x4x256xf32>
    %8 = arith.mulf %7, %7 : vector<1x4x256xf32>
    %9 = vector.shape_cast %8 : vector<1x4x256xf32> to vector<1x1x4x256xf32>
    %cst_3 = arith.constant dense<0.000000e+00> : vector<1xf32>
    %10 = vector.multi_reduction <add>, %9, %cst_3 [1, 2, 3] : vector<1x1x4x256xf32> to vector<1xf32>
    %11 = vector.shape_cast %10 : vector<1xf32> to vector<1x1x1x1xf32>
    %12 = vector.extract %11[0, 0, 0, 0] : f32 from vector<1x1x1x1xf32>
    %cst_4 = arith.constant 1.023000e+03 : f32
    %13 = arith.divf %12, %cst_4 : f32
    %14 = math.sqrt %13 : f32
    %c0_5 = arith.constant 0 : index
    %c0_6 = arith.constant 0 : index
    %c0_7 = arith.constant 0 : index
    %15 = vector.load %arg2[%c0_5, %c0_6, %c0_7] : memref<1x4x1xf32, #tpu.memory_space<vmem>>, vector<1x4x1xf32>
    %c0_8 = arith.constant 0 : index
    %c0_9 = arith.constant 0 : index
    %c0_10 = arith.constant 0 : index
    %16 = vector.load %arg3[%c0_8, %c0_9, %c0_10] : memref<1x4x1xf32, #tpu.memory_space<vmem>>, vector<1x4x1xf32>
    %cst_11 = arith.constant 9.99999974E-6 : f32
    %17 = arith.addf %14, %cst_11 : f32
    %18 = vector.broadcast %17 : f32 to vector<1x4x1xf32>
    %19 = arith.divf %15, %18 : vector<1x4x1xf32>
    %20 = vector.broadcast %19 : vector<1x4x1xf32> to vector<1x4x256xf32>
    %21 = arith.mulf %7, %20 : vector<1x4x256xf32>
    %22 = vector.broadcast %16 : vector<1x4x1xf32> to vector<1x4x256xf32>
    %23 = arith.addf %21, %22 : vector<1x4x256xf32>
    %c0_12 = arith.constant 0 : index
    %c0_13 = arith.constant 0 : index
    %c0_14 = arith.constant 0 : index
    %24 = vector.load %arg4[%c0_12, %c0_13, %c0_14] : memref<1x4x256xf32, #tpu.memory_space<vmem>>, vector<1x4x256xf32>
    tpu.vector_store %arg4[%c0_12, %c0_13, %c0_14], %23 {strides = array<i32>} : memref<1x4x256xf32, #tpu.memory_space<vmem>>, vector<1x4x256xf32>,
    return
  }
  func.func @transform_0(%arg0: i32) -> (i32, i32, i32) {
    %c0_i32 = arith.constant 0 : i32
    %c0_i32_0 = arith.constant 0 : i32
    %c0_i32_1 = arith.constant 0 : i32
    return %arg0, %c0_i32, %c0_i32_0 : i32, i32, i32
  }
  func.func @transform_1(%arg0: i32) -> (i32, i32, i32) {
    %c0_i32 = arith.constant 0 : i32
    %c0_i32_0 = arith.constant 0 : i32
    %c0_i32_1 = arith.constant 0 : i32
    %c0_i32_2 = arith.constant 0 : i32
    return %c0_i32, %c0_i32_0, %c0_i32_1 : i32, i32, i32
  }
  func.func @transform_2(%arg0: i32) -> (i32, i32, i32) {
    %c0_i32 = arith.constant 0 : i32
    %c0_i32_0 = arith.constant 0 : i32
    %c0_i32_1 = arith.constant 0 : i32
    %c0_i32_2 = arith.constant 0 : i32
    return %c0_i32, %c0_i32_0, %c0_i32_1 : i32, i32, i32
  }
  func.func @transform_3(%arg0: i32) -> (i32, i32, i32) {
    %c0_i32 = arith.constant 0 : i32
    %c0_i32_0 = arith.constant 0 : i32
    %c0_i32_1 = arith.constant 0 : i32
    return %arg0, %c0_i32, %c0_i32_0 : i32, i32, i32
  }
}

</mosaic_0001>

<llo_original>
// kernel: tpu_custom_call.1
$region0: #{tpu_custom_call.1}
  #allocation0 [shape = 'u32[]', space=smem, size = 0x4, offset = 0x4, fixed_abs, tag = 'smem constant byte address 0x4 - core index']
  #allocation1 [shape = 'u32[144,128]{1,0:T(1,128)}', space=vmem, size = 0x12000, scoped, tag = 'internal scratch']
  %s0 = inlined_call_operand.hbm [shape: f32[2,4,256], index: 0, kind: input, shape index: {}]
  %s1 = inlined_call_operand.vmem [shape: f32[1,4,1], index: 1, kind: input, shape index: {}]
  %s2 = inlined_call_operand.vmem [shape: f32[1,4,1], index: 2, kind: input, shape index: {}]
  %s3 = inlined_call_operand.hbm [shape: f32[2,4,256], index: 3, kind: output, shape index: {}]
  %s4 = sld [smem:[#allocation0]]
  $region49: #{tpu_custom_call.1} parent=0
    _
  %s6 = ssub.s32 1, %s4
  %s7 = scalar_select 0, %s6, %s4
  $region1: #{tpu_custom_call.1} parent=0
    #allocation2 [shape = 'u8[8192]{0}', space=vmem, size = 0x2000, scoped, tag = 'input window, operand 0']
    #allocation3 [shape = 's32[2]{0}', space=sflag, size = 0x8, scoped, tag = 'scoped memory for tpu_custom_call.1']
    #allocation4 [shape = 's32[2]{0}', space=sflag, size = 0x8, scoped, tag = 'scoped memory for tpu_custom_call.1']
    #allocation5 [shape = 'u8[8192]{0}', space=vmem, size = 0x2000, scoped, tag = 'output window, operand 0']
    %8 = vsyncpa [#allocation3], 0
    %s9 = scalar_lea.sflag [#allocation3], 1
    %10 = vsyncpa %s9, 0
    %11 = vsyncpa [#allocation4], 0
    %s12 = scalar_lea.sflag [#allocation4], 1
    %13 = vsyncpa %s12, 0
    loop: start=0, step=1, limit=4
    $region2: #{tpu_custom_call.1} parent=1 // loop_pre_header
      _
    $region3: #{tpu_custom_call.1} parent=1 // loop_header
      %s15 = sphi 0, %s19
      %p16 = scmp.ge.s32.totalorder %s15, 4
      %s25 = sphi 0, %s27
      %s28 = sphi 0, %s25
      %s29 = sphi 0, %s28
      %s45 = sphi 0, %s29
      %s49 = sphi 0, %s49
      %s51 = sphi 0, %s49
      %s52 = sphi 0, %s51
      %s66 = sphi 0, %s52
      %s70 = sphi 0, %s70
      %s72 = sphi 0, %s70
      %s73 = sphi 0, %s72
      %s87 = sphi 0, %s73
      %s93 = sphi 0, %s95
      %s96 = sphi 0, %s93
      %s97 = sphi 0, %s96
      %s113 = sphi 0, %s97
    $region4: #{tpu_custom_call.1} parent=1 // loop_header_branch
      %18 = sbr.rel (%p16) target = $region8
    $region5: #{tpu_custom_call.1} parent=1 // loop_body
      %s20 = ssub.s32 %s15, 1
      %s21 = ssub.s32 %s15, 2
      %s22 = sadd.s32 %s15, 1
      %s23 = ssub.s32 %s15, %s22
      %p24 = scmp.eq.s32.totalorder %s23, 0
      %s26 = sadd.s32 %s25, 1
      %s27 = scalar_select %p24, %s25, %s26
      %p30 = pneg %p24
      %p31 = scmp.eq.s32.totalorder %s15, 1
      %p32 = por %p30, %p31
      %p33 = scmp.ne.s32.totalorder %s25, %s28
      %p34 = scmp.eq.s32.totalorder %s15, 0
      %p35 = por %p33, %p34
      %p36 = scmp.ne.s32.totalorder %s25, %s28
      %p37 = scmp.eq.s32.totalorder %s20, 1
      %p38 = por %p36, %p37
      %p39 = scmp.ne.s32.totalorder %s28, %s29
      %p40 = scmp.eq.s32.totalorder %s20, 0
      %p41 = por %p39, %p40
      %p42 = scmp.ne.s32.totalorder %s28, %s29
      %p43 = scmp.eq.s32.totalorder %s21, 1
      %p44 = por %p42, %p43
      %p46 = scmp.ne.s32.totalorder %s29, %s45
      %p47 = scmp.eq.s32.totalorder %s21, 0
      %p48 = por %p46, %p47
      %s50 = sadd.s32 %s49, 1
      %p53 = scmp.eq.s32.totalorder %s15, 1
      %p54 = scmp.ne.s32.totalorder %s49, %s51
      %p55 = scmp.eq.s32.totalorder %s15, 0
      %p56 = por %p54, %p55
      %p57 = scmp.ne.s32.totalorder %s49, %s51
      %p58 = scmp.eq.s32.totalorder %s20, 1
      %p59 = por %p57, %p58
      %p60 = scmp.ne.s32.totalorder %s51, %s52
      %p61 = scmp.eq.s32.totalorder %s20, 0
      %p62 = por %p60, %p61
      %p63 = scmp.ne.s32.totalorder %s51, %s52
      %p64 = scmp.eq.s32.totalorder %s21, 1
      %p65 = por %p63, %p64
      %p67 = scmp.ne.s32.totalorder %s52, %s66
      %p68 = scmp.eq.s32.totalorder %s21, 0
      %p69 = por %p67, %p68
      %s71 = sadd.s32 %s70, 1
      %p74 = scmp.eq.s32.totalorder %s15, 1
      %p75 = scmp.ne.s32.totalorder %s70, %s72
      %p76 = scmp.eq.s32.totalorder %s15, 0
      %p77 = por %p75, %p76
      %p78 = scmp.ne.s32.totalorder %s70, %s72
      %p79 = scmp.eq.s32.totalorder %s20, 1
      %p80 = por %p78, %p79
      %p81 = scmp.ne.s32.totalorder %s72, %s73
      %p82 = scmp.eq.s32.totalorder %s20, 0
      %p83 = por %p81, %p82
      %p84 = scmp.ne.s32.totalorder %s72, %s73
      %p85 = scmp.eq.s32.totalorder %s21, 1
      %p86 = por %p84, %p85
      %p88 = scmp.ne.s32.totalorder %s73, %s87
      %p89 = scmp.eq.s32.totalorder %s21, 0
      %p90 = por %p88, %p89
      %s91 = ssub.s32 %s15, %s22
      %p92 = scmp.eq.s32.totalorder %s91, 0
      %s94 = sadd.s32 %s93, 1
      %s95 = scalar_select %p92, %s93, %s94
      %p98 = pneg %p92
      %p99 = scmp.eq.s32.totalorder %s15, 1
      %p100 = por %p98, %p99
      %p101 = scmp.ne.s32.totalorder %s93, %s96
      %p102 = scmp.eq.s32.totalorder %s15, 0
      %p103 = por %p101, %p102
      %p104 = scmp.ne.s32.totalorder %s93, %s96
      %p105 = scmp.eq.s32.totalorder %s20, 1
      %p106 = por %p104, %p105
      %p107 = scmp.ne.s32.totalorder %s96, %s97
      %p108 = scmp.eq.s32.totalorder %s20, 0
      %p109 = por %p107, %p108
      %p110 = scmp.ne.s32.totalorder %s96, %s97
      %p111 = scmp.eq.s32.totalorder %s21, 1
      %p112 = por %p110, %p111
      %p114 = scmp.ne.s32.totalorder %s97, %s113
      %p115 = scmp.eq.s32.totalorder %s21, 0
      %p116 = por %p114, %p115
      %p117 = scmp.le.s32.totalorder 1, %s15
      %p118 = scmp.lt.s32.totalorder %s15, 3
      %p119 = pnand %p117, %p118
      %p120 = pneg %p119
      // Predicated region
      $region9: #{tpu_custom_call.1} parent=5 // pred_check
        _
      $region10: #{tpu_custom_call.1} parent=5 // pred_check_branch
        %122 = sbr.rel (%p119) target = $region12
      $region11: #{tpu_custom_call.1} parent=5 // pred_region
        %s123 = ssub.s32 %s15, 1
        // Predicated region
        $region13: #{tpu_custom_call.1} parent=11 // pred_check
          %p124 = pneg %p62
        $region14: #{tpu_custom_call.1} parent=11 // pred_check_branch
          %126 = sbr.rel (%p124) target = $region16
        $region15: #{tpu_custom_call.1} parent=11 // pred_region
          _
        $region16: #{tpu_custom_call.1} parent=11 // pred_fallthru
          _
        // Predicated region
        $region17: #{tpu_custom_call.1} parent=11 // pred_check
          %p127 = pneg %p83
        $region18: #{tpu_custom_call.1} parent=11 // pred_check_branch
          %129 = sbr.rel (%p127) target = $region20
        $region19: #{tpu_custom_call.1} parent=11 // pred_region
          _
        $region20: #{tpu_custom_call.1} parent=11 // pred_fallthru
          _
      $region12: #{tpu_custom_call.1} parent=5 // pred_fallthru
        _
      %p130 = scmp.lt.s32.totalorder %s15, 2
      // Predicated region
      $region21: #{tpu_custom_call.1} parent=5 // pred_check
        %p131 = pneg %p130
      $region22: #{tpu_custom_call.1} parent=5 // pred_check_branch
        %133 = sbr.rel (%p131) target = $region24
      $region23: #{tpu_custom_call.1} parent=5 // pred_region
        // Predicated region
        $region25: #{tpu_custom_call.1} parent=23 // pred_check
          %p134 = pneg %p35
        $region26: #{tpu_custom_call.1} parent=23 // pred_check_branch
          %136 = sbr.rel (%p134) target = $region28
        $region27: #{tpu_custom_call.1} parent=23 // pred_region
          %s137 = sand.u32 %s25, 1
          %s138 = scalar_lea.sflag [#allocation3], %s137
          %s139 = sand.u32 %s25, 1
          %s140 = smul.addr %s139, 8
          %s141 = scalar_lea.vmem [#allocation2], %s140
          %s143 = ssub.s32 128, 128
          %144 = vsyncadd %s138, %s143
          %s145 = smul.addr %s15, 2
          %s146 = smul.addr %s145, 64
          %s147 = scalar_lea.hbm %s0, %s146
          %s149 = sshll.u32 %s141, 4
          %s150 = int_to_ptr.vmem [resolvable:$true] %s149
          %152 = dma.hbm_to_vmem [thread:$0]  %s147, 128, %s150, %s138
        $region28: #{tpu_custom_call.1} parent=23 // pred_fallthru
          _
      $region24: #{tpu_custom_call.1} parent=5 // pred_fallthru
        _
      %p153 = scmp.le.s32.totalorder 1, %s15
      %p154 = scmp.lt.s32.totalorder %s15, 3
      %p155 = pnand %p153, %p154
      %p156 = pneg %p155
      // Predicated region
      $region29: #{tpu_custom_call.1} parent=5 // pred_check
        _
      $region30: #{tpu_custom_call.1} parent=5 // pred_check_branch
        %158 = sbr.rel (%p155) target = $region32
      $region31: #{tpu_custom_call.1} parent=5 // pred_region
        %s159 = ssub.s32 %s15, 1
        %s160 = sand.u32 %s28, 1
        %s161 = scalar_lea.sflag [#allocation3], %s160
        %s162 = sand.u32 %s28, 1
        %s163 = smul.addr %s162, 8
        %s164 = scalar_lea.vmem [#allocation2], %s163
        // Predicated region
        $region33: #{tpu_custom_call.1} parent=31 // pred_check
          %p165 = pneg %p41
        $region34: #{tpu_custom_call.1} parent=31 // pred_check_branch
          %167 = sbr.rel (%p165) target = $region36
        $region35: #{tpu_custom_call.1} parent=31 // pred_region
          %168 = dma.done %s161, 128
        $region36: #{tpu_custom_call.1} parent=31 // pred_fallthru
          _
        %s169 = sand.u32 %s28, 1
        %s170 = scalar_lea.sflag [#allocation3], %s169
        %s171 = sand.u32 %s28, 1
        %s172 = smul.addr %s171, 8
        %s173 = scalar_lea.vmem [#allocation2], %s172
        %p174 = pneg %p41
        %p175 = pneg %p38
        %p176 = pneg %p62
        %p177 = pneg %p59
        %p178 = pneg %p83
        %p179 = pneg %p80
        %p180 = pneg %p109
        %p181 = pneg %p106
        %s182 = sand.u32 %s96, 1
        %s183 = scalar_lea.sflag [#allocation4], %s182
        %s184 = sand.u32 %s96, 1
        %s185 = smul.addr %s184, 8
        %s186 = scalar_lea.vmem [#allocation5], %s185
        %v187 = vld [vmem:[%s164] sm:$0xff]
        %v189 = vcombine.high %v187, %v187
        %vm191 = vcmask 1043456
        %v192 = vsel %vm191, %v187, 0.0
        %v193 = vsel %vm191, %v189, 0.0
        %v194 = vadd.f32 %v192, %v193
        %195 = vadd.xlane.f32.xlu0 %v194
        %v196 = vpop.xlane.xlu0 %195
        %v197 = vrot.slane %v196, 4
        %v198 = vadd.f32 %v196, %v197
        %v199 = vrot.slane %v198, 2
        %v200 = vadd.f32 %v198, %v199
        %v201 = vrot.slane %v200, 1
        %v202 = vadd.f32 %v200, %v201
        %s203 = vtos %v202
        %v204 = vrcp.pop 1024.0
        %s205 = vtos %v204
        %s206 = smul.f32 %s203, %s205
        %v207 = vstv %s206
        %v208 = vsub.f32 %v187, %v207
        %v209 = vmul.f32 %v208, %v208
        %v211 = vcombine.high %v209, %v209
        %v213 = vsel %vm191, %v209, 0.0
        %v214 = vsel %vm191, %v211, 0.0
        %v215 = vadd.f32 %v213, %v214
        %216 = vadd.xlane.f32.xlu0 %v215
        %v217 = vpop.xlane.xlu0 %216
        %v218 = vrot.slane %v217, 4
        %v219 = vadd.f32 %v217, %v218
        %v220 = vrot.slane %v219, 2
        %v221 = vadd.f32 %v219, %v220
        %v222 = vrot.slane %v221, 1
        %v223 = vadd.f32 %v221, %v222
        %s224 = vtos %v223
        %v225 = vrcp.pop 1023.0
        %s226 = vtos %v225
        %s227 = smul.f32 %s224, %s226
        %v228 = vstv %s227
        %v229 = vrsqrt.pop %v228
        %v230 = vmul.f32 %v228, %v229
        %vm231 = vcmp.eq.f32.partialorder %v228, inf
        %v232 = vsel %vm231, %v228, %v230
        %vm233 = vcmp.eq.f32.partialorder %v228, 0.0
        %v234 = vand.u32 %v228, 2147483648
        %v235 = vsel %vm233, %v234, %v232
        %s236 = vtos %v235
        %v237 = vld [vmem:[%s1] sm:$0xf]
        %v238 = vld [vmem:[%s2] sm:$0xf]
        %s239 = sadd.f32 %s236, 1e-05
        %v240 = vstv %s239
        %v241 = vrcp.pop %v240
        %v242 = vmul.f32 %v237, %v241
        %244 = vset.pattern.permute.xlu0 0
        %245 = vperm.xlu0 %244, %v242
        %v246 = vpop.permute.xlu0 %245
        %v248 = vunpack.c.l.s4 839922192
        %v249 = vunpack.c.0.s8 %v248
        %v250 = vlaneseq
        %v251 = vshrl.u32 %v250, 7
        %v252 = vsub.s32 %v249, %v251
        %v253 = vrot.slane %v246, %v252
        %v255 = vmul.f32 %v208, %v253
        %257 = vset.pattern.permute.xlu0 0
        %258 = vperm.xlu0 %257, %v238
        %v259 = vpop.permute.xlu0 %258
        %v261 = vunpack.c.l.s4 839922192
        %v262 = vunpack.c.0.s8 %v261
        %v263 = vlaneseq
        %v264 = vshrl.u32 %v263, 7
        %v265 = vsub.s32 %v262, %v264
        %v266 = vrot.slane %v259, %v265
        %v268 = vadd.f32 %v255, %v266
        %269 = vst [vmem:[%s186] sm:$0xff] %v268
        %s270 = sand.u32 %s96, 1
        %s271 = scalar_lea.sflag [#allocation4], %s270
        %s272 = sand.u32 %s96, 1
        %s273 = smul.addr %s272, 8
        %s274 = scalar_lea.vmem [#allocation5], %s273
        // Predicated region
        $region37: #{tpu_custom_call.1} parent=31 // pred_check
          %p275 = pneg %p106
        $region38: #{tpu_custom_call.1} parent=31 // pred_check_branch
          %277 = sbr.rel (%p275) target = $region40
        $region39: #{tpu_custom_call.1} parent=31 // pred_region
          %s279 = ssub.s32 128, 128
          %280 = vsyncadd %s271, %s279
          %s281 = smul.addr %s20, 2
          %s282 = smul.addr %s281, 64
          %s283 = scalar_lea.hbm %s3, %s282
          %s285 = sshll.u32 %s274, 4
          %s286 = int_to_ptr.vmem [resolvable:$true] %s285
          %288 = dma.vmem_to_hbm [thread:$0]  %s286, 128, %s283, %s271
        $region40: #{tpu_custom_call.1} parent=31 // pred_fallthru
          _
      $region32: #{tpu_custom_call.1} parent=5 // pred_fallthru
        _
      %p289 = scmp.le.s32.totalorder 2, %s15
      // Predicated region
      $region41: #{tpu_custom_call.1} parent=5 // pred_check
        %p290 = pneg %p289
      $region42: #{tpu_custom_call.1} parent=5 // pred_check_branch
        %292 = sbr.rel (%p290) target = $region44
      $region43: #{tpu_custom_call.1} parent=5 // pred_region
        %s293 = ssub.s32 %s15, 2
        // Predicated region
        $region45: #{tpu_custom_call.1} parent=43 // pred_check
          %p294 = pneg %p112
        $region46: #{tpu_custom_call.1} parent=43 // pred_check_branch
          %296 = sbr.rel (%p294) target = $region48
        $region47: #{tpu_custom_call.1} parent=43 // pred_region
          %s297 = sand.u32 %s97, 1
          %s298 = scalar_lea.sflag [#allocation4], %s297
          %s299 = sand.u32 %s97, 1
          %s300 = smul.addr %s299, 8
          %s301 = scalar_lea.vmem [#allocation5], %s300
          %302 = dma.done %s298, 128
        $region48: #{tpu_custom_call.1} parent=43 // pred_fallthru
          _
      $region44: #{tpu_custom_call.1} parent=5 // pred_fallthru
        _
    $region6: #{tpu_custom_call.1} parent=1 // loop_footer
      %s19 = sadd.s32 1, %s15
    $region7: #{tpu_custom_call.1} parent=1 // loop_footer_branch
      %14 = sbr.rel target = $region3
    $region8: #{tpu_custom_call.1} parent=1 // loop_exit
      _
    %303 = vsyncpa [#allocation3], 1
    %s304 = scalar_lea.sflag [#allocation3], 1
    %305 = vsyncpa %s304, 1
    %306 = vsyncpa [#allocation4], 1
    %s307 = scalar_lea.sflag [#allocation4], 1
    %308 = vsyncpa %s307, 1

</llo_original>
